<compile_context>
chip_gen: v7x
topology: tpu7x:2x2x1
jax: 0.10.0
libtpu: 0.0.40
codegen_flags: <defaults>
</compile_context>

<pallas_src>
import math
from functools import partial

import jax
import jax.numpy as jnp
from jax.experimental import pallas as pl
from jax.experimental.pallas import tpu as pltpu

F32_MIN = float(jnp.finfo(jnp.float32).min)


# ----------------------------- kernel A ------------------------------------
def _kv_proj_kernel(key_ref, value_ref, wk_ref, bk_ref, wv_ref, bv_ref,
                    k_out_ref, v_out_ref):
    x_k = key_ref[0]      # (T2, F)
    x_v = value_ref[0]    # (T2, F)
    k_out_ref[0] = (jnp.dot(x_k, wk_ref[...], preferred_element_type=jnp.float32)
                    + bk_ref[...])
    v_out_ref[0] = (jnp.dot(x_v, wv_ref[...], preferred_element_type=jnp.float32)
                    + bv_ref[...])


# ----------------------------- kernel B ------------------------------------
def _attn_kernel(q_in_ref, k_ref, v_ref, mask_ref,
                 wq_ref, bq_ref, wo_ref, bo_ref, out_ref, *, n_head, d_k):
    # Fused: Q projection + per-head attention + output linear for one
    # (batch, q-tile) grid step.  Scores stay resident in VMEM/vregs.
    x_q = q_in_ref[0]                                             # (tq, F)
    q = jnp.dot(x_q, wq_ref[...], preferred_element_type=jnp.float32) + bq_ref[...]
    k = k_ref[0]                                                  # (T2, F)
    v = v_ref[0]                                                  # (T2, F)
    wo = wo_ref[...]                                              # (F, F)

    # Mask predicate computed once per grid step (shared by all heads).
    mask_zero = mask_ref[0] == 0.0                                # (1 or tq, T2)
    scale = 1.0 / math.sqrt(d_k)

    tq, feat = q.shape
    out_acc = jnp.zeros((tq, feat), jnp.float32)

    for h in range(n_head):                                       # static unroll
        sl = slice(h * d_k, (h + 1) * d_k)
        q_h = q[:, sl]                                            # (tq, d_k)
        k_h = k[:, sl]                                            # (T2, d_k)
        v_h = v[:, sl]                                            # (T2, d_k)

        scores = jax.lax.dot_general(q_h, k_h, (((1,), (1,)), ((), ())),
                                     preferred_element_type=jnp.float32) * scale
        scores = jnp.where(mask_zero, F32_MIN, scores)            # masked_fill(min)
        smax = jnp.max(scores, axis=-1, keepdims=True)
        probs = jnp.exp(scores - smax)
        denom = jnp.sum(probs, axis=-1, keepdims=True)
        attn = probs * pl.reciprocal(denom, approx=True)          # EUP slot, ~free
        attn = jnp.where(mask_zero, 0.0, attn)                    # masked_fill(0.0)

        ctx = jnp.dot(attn, v_h, preferred_element_type=jnp.float32)      # (tq, d_k)
        # Fold the output projection per head: accumulate directly into the
        # lane-dense (tq, F) slab (no concatenate, no lane-sparse ctx stores).
        out_acc = out_acc + jnp.dot(ctx, wo[sl, :],
                                    preferred_element_type=jnp.float32)

    out_ref[0] = out_acc + bo_ref[...]


# ------------------------------ wrapper ------------------------------------
def _pick_q_tile(t1):
    """Largest q-tile that divides time1; bounds VMEM for long sequences."""
    for cand in (512, 256, 128):
        if t1 > cand and t1 % cand == 0:
            return cand
    return t1


def mha_forward(query, key, value, mask, params, n_head):
    B, T1, F = query.shape
    T2 = key.shape[1]
    d_k = F // n_head
    mrows = mask.shape[1]   # 1 or T1

    # ---- kernel A: K / V projections (lane-dense outputs) ----
    k_proj, v_proj = pl.pallas_call(
        _kv_proj_kernel,
        grid=(B,),
        in_specs=[
            pl.BlockSpec((1, T2, F), lambda b: (b, 0, 0)),        # key
            pl.BlockSpec((1, T2, F), lambda b: (b, 0, 0)),        # value
            pl.BlockSpec((F, F), lambda b: (0, 0)),               # Wk^T
            pl.BlockSpec((1, F), lambda b: (0, 0)),               # bk
            pl.BlockSpec((F, F), lambda b: (0, 0)),               # Wv^T
            pl.BlockSpec((1, F), lambda b: (0, 0)),               # bv
        ],
        out_specs=(
            pl.BlockSpec((1, T2, F), lambda b: (b, 0, 0)),
            pl.BlockSpec((1, T2, F), lambda b: (b, 0, 0)),
        ),
        out_shape=(
            jax.ShapeDtypeStruct((B, T2, F), jnp.float32),
            jax.ShapeDtypeStruct((B, T2, F), jnp.float32),
        ),
        compiler_params=pltpu.CompilerParams(dimension_semantics=("parallel",)),
    )(key, value, params["wk"], params["bk"], params["wv"], params["bv"])

    # ---- kernel B: fused Q projection + attention + output linear ----
    tq = _pick_q_tile(T1)
    nq = T1 // tq

    if mrows == 1:
        mask_spec = pl.BlockSpec((1, 1, T2), lambda b, qi: (b, 0, 0))
    else:
        mask_spec = pl.BlockSpec((1, tq, T2), lambda b, qi: (b, qi, 0))

    out = pl.pallas_call(
        partial(_attn_kernel, n_head=n_head, d_k=d_k),
        grid=(B, nq),
        in_specs=[
            pl.BlockSpec((1, tq, F), lambda b, qi: (b, qi, 0)),   # query tile
            pl.BlockSpec((1, T2, F), lambda b, qi: (b, 0, 0)),    # K proj (revisited)
            pl.BlockSpec((1, T2, F), lambda b, qi: (b, 0, 0)),    # V proj (revisited)
            mask_spec,                                            # mask
            pl.BlockSpec((F, F), lambda b, qi: (0, 0)),           # Wq^T
            pl.BlockSpec((1, F), lambda b, qi: (0, 0)),           # bq
            pl.BlockSpec((F, F), lambda b, qi: (0, 0)),           # Wo^T
            pl.BlockSpec((1, F), lambda b, qi: (0, 0)),           # bo
        ],
        out_specs=pl.BlockSpec((1, tq, F), lambda b, qi: (b, qi, 0)),
        out_shape=jax.ShapeDtypeStruct((B, T1, F), jnp.float32),
        compiler_params=pltpu.CompilerParams(
            dimension_semantics=("parallel", "parallel")),
    )(query, k_proj, v_proj, mask,
      params["wq"], params["bq"], params["wo"], params["bo"])

    return out
    # TODO(synk): for very long time2, tile the key axis inside kernel B with an
    # online (flash-style) softmax instead of holding full K/V per batch in VMEM.


# --------------------------- pure-JAX reference -----------------------------
def reference_forward(query, key, value, mask, params, n_head):
    HI = jax.lax.Precision.HIGHEST
    B, T1, F = query.shape
    d_k = F // n_head

    q = jnp.dot(query, params["wq"], precision=HI) + params["bq"]
    k = jnp.dot(key, params["wk"], precision=HI) + params["bk"]
    v = jnp.dot(value, params["wv"], precision=HI) + params["bv"]

    def to_heads(x):
        b = x.shape[0]
        return x.reshape(b, -1, n_head, d_k).transpose(0, 2, 1, 3)

    q, k, v = map(to_heads, (q, k, v))

    scores = jnp.einsum("bhtd,bhsd->bhts", q, k, precision=HI) / math.sqrt(d_k)
    m = mask[:, None, :, :] == 0.0
    scores = jnp.where(m, F32_MIN, scores)
    attn = jax.nn.softmax(scores, axis=-1)
    attn = jnp.where(m, 0.0, attn)

    x = jnp.einsum("bhts,bhsd->bhtd", attn, v, precision=HI)
    x = x.transpose(0, 2, 1, 3).reshape(B, T1, F)
    return jnp.dot(x, params["wo"], precision=HI) + params["bo"]


# --------------------------------- main -------------------------------------
if __name__ == "__main__":
    B, T, n_head, n_feat = 2, 8, 4, 32
    d_k = n_feat // n_head

    root = jax.random.PRNGKey(0)
    ks = jax.random.split(root, 16)
    s = 1.0 / math.sqrt(n_feat)

    def init(kk, shape, scale):
        return jax.random.normal(kk, shape, jnp.float32) * scale

    params = {
        "wq": init(ks[0], (n_feat, n_feat), s), "bq": init(ks[1], (1, n_feat), s),
        "wk": init(ks[2], (n_feat, n_feat), s), "bk": init(ks[3], (1, n_feat), s),
        "wv": init(ks[4], (n_feat, n_feat), s), "bv": init(ks[5], (1, n_feat), s),
        "wo": init(ks[6], (n_feat, n_feat), s), "bo": init(ks[7], (1, n_feat), s),
    }

    query = jax.random.normal(ks[8], (B, T, n_feat), jnp.float32)
    key_in = jax.random.normal(ks[9], (B, T, n_feat), jnp.float32)
    value = jax.random.normal(ks[10], (B, T, n_feat), jnp.float32)

    # mask: (B, 1, T2); 1.0 = keep, 0.0 = masked (mask last 2 key positions of batch 1)
    mask = jnp.ones((B, 1, T), jnp.float32)
    mask = mask.at[1, 0, 6:].set(0.0)

    out = mha_forward(query, key_in, value, mask, params, n_head)
    out = jax.block_until_ready(out)

    ref = reference_forward(query, key_in, value, mask, params, n_head)
    ref = jax.block_until_ready(ref)

    if not jnp.allclose(out, ref, rtol=2e-2, atol=2e-2):
        raise RuntimeError(
            f"mismatch vs reference, max abs diff = {float(jnp.max(jnp.abs(out - ref)))}")

    print("KERNEL_OK")
</pallas_src>

<mosaic_0001>
module attributes {stable_mosaic.version = 11 : i64} {
  func.func @_kv_proj_kernel(%arg0: i32, %arg1: memref<1x8x32xf32, #tpu.memory_space<vmem>>, %arg2: memref<1x8x32xf32, #tpu.memory_space<vmem>>, %arg3: memref<32x32xf32, #tpu.memory_space<vmem>>, %arg4: memref<1x32xf32, #tpu.memory_space<vmem>>, %arg5: memref<32x32xf32, #tpu.memory_space<vmem>>, %arg6: memref<1x32xf32, #tpu.memory_space<vmem>>, %arg7: memref<1x8x32xf32, #tpu.memory_space<vmem>>, %arg8: memref<1x8x32xf32, #tpu.memory_space<vmem>>) attributes {dimension_semantics = [#tpu.dimension_semantics<parallel>], iteration_bounds = array<i64: 2>, scalar_prefetch = 0 : i64, scratch_operands = 0 : i64, tpu.core_type = #tpu.core_type<tc>, window_params = [{transform_indices = @transform_0, window_bounds = array<i64: 1, 8, 32>}, {transform_indices = @transform_1, window_bounds = array<i64: 1, 8, 32>}, {pipeline_mode = #tpu.pipeline_mode<synchronous>, transform_indices = @transform_2, window_bounds = array<i64: 32, 32>}, {pipeline_mode = #tpu.pipeline_mode<synchronous>, transform_indices = @transform_3, window_bounds = array<i64: 1, 32>}, {pipeline_mode = #tpu.pipeline_mode<synchronous>, transform_indices = @transform_4, window_bounds = array<i64: 32, 32>}, {pipeline_mode = #tpu.pipeline_mode<synchronous>, transform_indices = @transform_5, window_bounds = array<i64: 1, 32>}, {transform_indices = @transform_6, window_bounds = array<i64: 1, 8, 32>}, {transform_indices = @transform_7, window_bounds = array<i64: 1, 8, 32>}]} {
    %c0 = arith.constant 0 : index
    %c0_0 = arith.constant 0 : index
    %c0_1 = arith.constant 0 : index
    %0 = vector.load %arg1[%c0, %c0_0, %c0_1] : memref<1x8x32xf32, #tpu.memory_space<vmem>>, vector<1x8x32xf32>
    %1 = vector.shape_cast %0 : vector<1x8x32xf32> to vector<8x32xf32>
    %c0_2 = arith.constant 0 : index
    %c0_3 = arith.constant 0 : index
    %c0_4 = arith.constant 0 : index
    %2 = vector.load %arg2[%c0_2, %c0_3, %c0_4] : memref<1x8x32xf32, #tpu.memory_space<vmem>>, vector<1x8x32xf32>
    %3 = vector.shape_cast %2 : vector<1x8x32xf32> to vector<8x32xf32>
    %c0_5 = arith.constant 0 : index
    %c0_6 = arith.constant 0 : index
    %4 = vector.load %arg3[%c0_5, %c0_6] : memref<32x32xf32, #tpu.memory_space<vmem>>, vector<32x32xf32>
    %cst = arith.constant dense<0.000000e+00> : vector<8x32xf32>
    %5 = tpu.matmul %1, %4, %cst {dimension_numbers = #tpu.dot_dimension_numbers<[1], [0], [0], [1], [0, 0, 1, 1], [], []>} : vector<8x32xf32>, vector<32x32xf32>, vector<8x32xf32> -> vector<8x32xf32>
    %c0_7 = arith.constant 0 : index
    %c0_8 = arith.constant 0 : index
    %6 = vector.load %arg4[%c0_7, %c0_8] : memref<1x32xf32, #tpu.memory_space<vmem>>, vector<1x32xf32>
    %7 = vector.broadcast %6 : vector<1x32xf32> to vector<8x32xf32>
    %8 = arith.addf %5, %7 : vector<8x32xf32>
    %c0_9 = arith.constant 0 : index
    %c0_10 = arith.constant 0 : index
    %c0_11 = arith.constant 0 : index
    %9 = vector.load %arg7[%c0_9, %c0_10, %c0_11] : memref<1x8x32xf32, #tpu.memory_space<vmem>>, vector<1x8x32xf32>
    %10 = vector.shape_cast %9 : vector<1x8x32xf32> to vector<8x32xf32>
    %11 = vector.shape_cast %8 : vector<8x32xf32> to vector<1x8x32xf32>
    tpu.vector_store %arg7[%c0_9, %c0_10, %c0_11], %11 {strides = array<i32>} : memref<1x8x32xf32, #tpu.memory_space<vmem>>, vector<1x8x32xf32>,
    %c0_12 = arith.constant 0 : index
    %c0_13 = arith.constant 0 : index
    %12 = vector.load %arg5[%c0_12, %c0_13] : memref<32x32xf32, #tpu.memory_space<vmem>>, vector<32x32xf32>
    %cst_14 = arith.constant dense<0.000000e+00> : vector<8x32xf32>
    %13 = tpu.matmul %3, %12, %cst_14 {dimension_numbers = #tpu.dot_dimension_numbers<[1], [0], [0], [1], [0, 0, 1, 1], [], []>} : vector<8x32xf32>, vector<32x32xf32>, vector<8x32xf32> -> vector<8x32xf32>
    %c0_15 = arith.constant 0 : index
    %c0_16 = arith.constant 0 : index
    %14 = vector.load %arg6[%c0_15, %c0_16] : memref<1x32xf32, #tpu.memory_space<vmem>>, vector<1x32xf32>
    %15 = vector.broadcast %14 : vector<1x32xf32> to vector<8x32xf32>
    %16 = arith.addf %13, %15 : vector<8x32xf32>
    %c0_17 = arith.constant 0 : index
    %c0_18 = arith.constant 0 : index
    %c0_19 = arith.constant 0 : index
    %17 = vector.load %arg8[%c0_17, %c0_18, %c0_19] : memref<1x8x32xf32, #tpu.memory_space<vmem>>, vector<1x8x32xf32>
    %18 = vector.shape_cast %17 : vector<1x8x32xf32> to vector<8x32xf32>
    %19 = vector.shape_cast %16 : vector<8x32xf32> to vector<1x8x32xf32>
    tpu.vector_store %arg8[%c0_17, %c0_18, %c0_19], %19 {strides = array<i32>} : memref<1x8x32xf32, #tpu.memory_space<vmem>>, vector<1x8x32xf32>,
    return
  }
  func.func @transform_0(%arg0: i32) -> (i32, i32, i32) {
    %c0_i32 = arith.constant 0 : i32
    %c0_i32_0 = arith.constant 0 : i32
    %c0_i32_1 = arith.constant 0 : i32
    return %arg0, %c0_i32, %c0_i32_0 : i32, i32, i32
  }
  func.func @transform_1(%arg0: i32) -> (i32, i32, i32) {
    %c0_i32 = arith.constant 0 : i32
    %c0_i32_0 = arith.constant 0 : i32
    %c0_i32_1 = arith.constant 0 : i32
    return %arg0, %c0_i32, %c0_i32_0 : i32, i32, i32
  }
  func.func @transform_2(%arg0: i32) -> (i32, i32) {
    %c0_i32 = arith.constant 0 : i32
    %c0_i32_0 = arith.constant 0 : i32
    %c0_i32_1 = arith.constant 0 : i32
    return %c0_i32, %c0_i32_0 : i32, i32
  }
  func.func @transform_3(%arg0: i32) -> (i32, i32) {
    %c0_i32 = arith.constant 0 : i32
    %c0_i32_0 = arith.constant 0 : i32
    %c0_i32_1 = arith.constant 0 : i32
    return %c0_i32, %c0_i32_0 : i32, i32
  }
  func.func @transform_4(%arg0: i32) -> (i32, i32) {
    %c0_i32 = arith.constant 0 : i32
    %c0_i32_0 = arith.constant 0 : i32
    %c0_i32_1 = arith.constant 0 : i32
    return %c0_i32, %c0_i32_0 : i32, i32
  }
  func.func @transform_5(%arg0: i32) -> (i32, i32) {
    %c0_i32 = arith.constant 0 : i32
    %c0_i32_0 = arith.constant 0 : i32
    %c0_i32_1 = arith.constant 0 : i32
    return %c0_i32, %c0_i32_0 : i32, i32
  }
  func.func @transform_6(%arg0: i32) -> (i32, i32, i32) {
    %c0_i32 = arith.constant 0 : i32
    %c0_i32_0 = arith.constant 0 : i32
    %c0_i32_1 = arith.constant 0 : i32
    return %arg0, %c0_i32, %c0_i32_0 : i32, i32, i32
  }
  func.func @transform_7(%arg0: i32) -> (i32, i32, i32) {
    %c0_i32 = arith.constant 0 : i32
    %c0_i32_0 = arith.constant 0 : i32
    %c0_i32_1 = arith.constant 0 : i32
    return %arg0, %c0_i32, %c0_i32_0 : i32, i32, i32
  }
}

</mosaic_0001>

<llo_original>
// kernel: tpu_custom_call.1
$region0: #{tpu_custom_call.1}
  #allocation0 [shape = 'u32[]', space=smem, size = 0x4, offset = 0x4, fixed_abs, tag = 'smem constant byte address 0x4 - core index']
  #allocation1 [shape = 'u32[144,128]{1,0:T(1,128)}', space=vmem, size = 0x12000, scoped, tag = 'internal scratch']
  %s0 = inlined_call_operand.hbm [shape: f32[2,8,32], index: 0, kind: input, shape index: {}]
  %s1 = inlined_call_operand.hbm [shape: f32[2,8,32], index: 1, kind: input, shape index: {}]
  %s2 = inlined_call_operand.hbm [shape: f32[32,32], index: 2, kind: input, shape index: {}]
  %s3 = inlined_call_operand.vmem [shape: f32[1,32], index: 3, kind: input, shape index: {}]
  %s4 = inlined_call_operand.hbm [shape: f32[32,32], index: 4, kind: input, shape index: {}]
  %s5 = inlined_call_operand.vmem [shape: f32[1,32], index: 5, kind: input, shape index: {}]
  %s6 = inlined_call_operand.hbm [shape: f32[2,8,32], index: 6, kind: output, shape index: {0}]
  %s7 = inlined_call_operand.hbm [shape: f32[2,8,32], index: 7, kind: output, shape index: {1}]
  %8 = xla_tuple %s6, %s7
  %s9 = sld [smem:[#allocation0]]
  $region81: #{tpu_custom_call.1} parent=0
    _
  %s11 = ssub.s32 1, %s9
  %s12 = scalar_select 0, %s11, %s9
  $region1: #{tpu_custom_call.1} parent=0
    #allocation2 [shape = 'u8[8192]{0}', space=vmem, size = 0x2000, scoped, tag = 'input window, operand 0']
    #allocation3 [shape = 's32[2]{0}', space=sflag, size = 0x8, scoped, tag = 'scoped memory for tpu_custom_call.1']
    #allocation4 [shape = 's32[2]{0}', space=sflag, size = 0x8, scoped, tag = 'scoped memory for tpu_custom_call.1']
    #allocation5 [shape = 'u8[8192]{0}', space=vmem, size = 0x2000, scoped, tag = 'input window, operand 1']
    #allocation6 [shape = 's32[2]{0}', space=sflag, size = 0x8, scoped, tag = 'scoped memory for tpu_custom_call.1']
    #allocation7 [shape = 'u8[16384]{0}', space=vmem, size = 0x4000, scoped, tag = 'input window, operand 2, single buffered']
    #allocation8 [shape = 'u8[16384]{0}', space=vmem, size = 0x4000, scoped, tag = 'input window, operand 4, single buffered']
    #allocation9 [shape = 's32[1]{0}', space=sflag, size = 0x4, scoped, tag = 'scoped memory for tpu_custom_call.1']
    #allocation10 [shape = 'u8[8192]{0}', space=vmem, size = 0x2000, scoped, tag = 'output window, operand 0']
    #allocation11 [shape = 'u8[8192]{0}', space=vmem, size = 0x2000, scoped, tag = 'output window, operand 1']
    #allocation12 [shape = 's32[2]{0}', space=sflag, size = 0x8, scoped, tag = 'scoped memory for tpu_custom_call.1']
    %13 = vsyncpa [#allocation3], 0
    %s14 = scalar_lea.sflag [#allocation3], 1
    %15 = vsyncpa %s14, 0
    %16 = vsyncpa [#allocation6], 0
    %s17 = scalar_lea.sflag [#allocation6], 1
    %18 = vsyncpa %s17, 0
    %19 = vsyncpa [#allocation9], 0
    %20 = vsyncpa [#allocation4], 0
    %s21 = scalar_lea.sflag [#allocation4], 1
    %22 = vsyncpa %s21, 0
    %23 = vsyncpa [#allocation12], 0
    %s24 = scalar_lea.sflag [#allocation12], 1
    %25 = vsyncpa %s24, 0
    loop: start=0, step=1, limit=4
    $region2: #{tpu_custom_call.1} parent=1 // loop_pre_header
      _
    $region3: #{tpu_custom_call.1} parent=1 // loop_header
      %s27 = sphi 0, %s31
      %p28 = scmp.ge.s32.totalorder %s27, 4
      %s37 = sphi 0, %s39
      %s40 = sphi 0, %s37
      %s41 = sphi 0, %s40
      %s57 = sphi 0, %s41
      %s63 = sphi 0, %s65
      %s66 = sphi 0, %s63
      %s67 = sphi 0, %s66
      %s83 = sphi 0, %s67
      %s87 = sphi 0, %s87
      %s89 = sphi 0, %s87
      %s90 = sphi 0, %s89
      %s104 = sphi 0, %s90
      %s108 = sphi 0, %s108
      %s110 = sphi 0, %s108
      %s111 = sphi 0, %s110
      %s125 = sphi 0, %s111
      %s129 = sphi 0, %s129
      %s131 = sphi 0, %s129
      %s132 = sphi 0, %s131
      %s146 = sphi 0, %s132
      %s150 = sphi 0, %s150
      %s152 = sphi 0, %s150
      %s153 = sphi 0, %s152
      %s167 = sphi 0, %s153
      %s173 = sphi 0, %s175
      %s176 = sphi 0, %s173
      %s177 = sphi 0, %s176
      %s193 = sphi 0, %s177
      %s199 = sphi 0, %s201
      %s202 = sphi 0, %s199
      %s203 = sphi 0, %s202
      %s219 = sphi 0, %s203
    $region4: #{tpu_custom_call.1} parent=1 // loop_header_branch
      %30 = sbr.rel (%p28) target = $region8
    $region5: #{tpu_custom_call.1} parent=1 // loop_body
      %s32 = ssub.s32 %s27, 1
      %s33 = ssub.s32 %s27, 2
      %s34 = sadd.s32 %s27, 1
      %s35 = ssub.s32 %s27, %s34
      %p36 = scmp.eq.s32.totalorder %s35, 0
      %s38 = sadd.s32 %s37, 1
      %s39 = scalar_select %p36, %s37, %s38
      %p42 = pneg %p36
      %p43 = scmp.eq.s32.totalorder %s27, 1
      %p44 = por %p42, %p43
      %p45 = scmp.ne.s32.totalorder %s37, %s40
      %p46 = scmp.eq.s32.totalorder %s27, 0
      %p47 = por %p45, %p46
      %p48 = scmp.ne.s32.totalorder %s37, %s40
      %p49 = scmp.eq.s32.totalorder %s32, 1
      %p50 = por %p48, %p49
      %p51 = scmp.ne.s32.totalorder %s40, %s41
      %p52 = scmp.eq.s32.totalorder %s32, 0
      %p53 = por %p51, %p52
      %p54 = scmp.ne.s32.totalorder %s40, %s41
      %p55 = scmp.eq.s32.totalorder %s33, 1
      %p56 = por %p54, %p55
      %p58 = scmp.ne.s32.totalorder %s41, %s57
      %p59 = scmp.eq.s32.totalorder %s33, 0
      %p60 = por %p58, %p59
      %s61 = ssub.s32 %s27, %s34
      %p62 = scmp.eq.s32.totalorder %s61, 0
      %s64 = sadd.s32 %s63, 1
      %s65 = scalar_select %p62, %s63, %s64
      %p68 = pneg %p62
      %p69 = scmp.eq.s32.totalorder %s27, 1
      %p70 = por %p68, %p69
      %p71 = scmp.ne.s32.totalorder %s63, %s66
      %p72 = scmp.eq.s32.totalorder %s27, 0
      %p73 = por %p71, %p72
      %p74 = scmp.ne.s32.totalorder %s63, %s66
      %p75 = scmp.eq.s32.totalorder %s32, 1
      %p76 = por %p74, %p75
      %p77 = scmp.ne.s32.totalorder %s66, %s67
      %p78 = scmp.eq.s32.totalorder %s32, 0
      %p79 = por %p77, %p78
      %p80 = scmp.ne.s32.totalorder %s66, %s67
      %p81 = scmp.eq.s32.totalorder %s33, 1
      %p82 = por %p80, %p81
      %p84 = scmp.ne.s32.totalorder %s67, %s83
      %p85 = scmp.eq.s32.totalorder %s33, 0
      %p86 = por %p84, %p85
      %s88 = sadd.s32 %s87, 1
      %p91 = scmp.eq.s32.totalorder %s27, 1
      %p92 = scmp.ne.s32.totalorder %s87, %s89
      %p93 = scmp.eq.s32.totalorder %s27, 0
      %p94 = por %p92, %p93
      %p95 = scmp.ne.s32.totalorder %s87, %s89
      %p96 = scmp.eq.s32.totalorder %s32, 1
      %p97 = por %p95, %p96
      %p98 = scmp.ne.s32.totalorder %s89, %s90
      %p99 = scmp.eq.s32.totalorder %s32, 0
      %p100 = por %p98, %p99
      %p101 = scmp.ne.s32.totalorder %s89, %s90
      %p102 = scmp.eq.s32.totalorder %s33, 1
      %p103 = por %p101, %p102
      %p105 = scmp.ne.s32.totalorder %s90, %s104
      %p106 = scmp.eq.s32.totalorder %s33, 0
      %p107 = por %p105, %p106
      %s109 = sadd.s32 %s108, 1
      %p112 = scmp.eq.s32.totalorder %s27, 1
      %p113 = scmp.ne.s32.totalorder %s108, %s110
      %p114 = scmp.eq.s32.totalorder %s27, 0
      %p115 = por %p113, %p114
      %p116 = scmp.ne.s32.totalorder %s108, %s110
      %p117 = scmp.eq.s32.totalorder %s32, 1
      %p118 = por %p116, %p117
      %p119 = scmp.ne.s32.totalorder %s110, %s111
      %p120 = scmp.eq.s32.totalorder %s32, 0
      %p121 = por %p119, %p120
      %p122 = scmp.ne.s32.totalorder %s110, %s111
      %p123 = scmp.eq.s32.totalorder %s33, 1
      %p124 = por %p122, %p123
      %p126 = scmp.ne.s32.totalorder %s111, %s125
      %p127 = scmp.eq.s32.totalorder %s33, 0
      %p128 = por %p126, %p127
      %s130 = sadd.s32 %s129, 1
      %p133 = scmp.eq.s32.totalorder %s27, 1
      %p134 = scmp.ne.s32.totalorder %s129, %s131
      %p135 = scmp.eq.s32.totalorder %s27, 0
      %p136 = por %p134, %p135
      %p137 = scmp.ne.s32.totalorder %s129, %s131
      %p138 = scmp.eq.s32.totalorder %s32, 1
      %p139 = por %p137, %p138
      %p140 = scmp.ne.s32.totalorder %s131, %s132
      %p141 = scmp.eq.s32.totalorder %s32, 0
      %p142 = por %p140, %p141
      %p143 = scmp.ne.s32.totalorder %s131, %s132
      %p144 = scmp.eq.s32.totalorder %s33, 1
      %p145 = por %p143, %p144
      %p147 = scmp.ne.s32.totalorder %s132, %s146
      %p148 = scmp.eq.s32.totalorder %s33, 0
      %p149 = por %p147, %p148
      %s151 = sadd.s32 %s150, 1
      %p154 = scmp.eq.s32.totalorder %s27, 1
      %p155 = scmp.ne.s32.totalorder %s150, %s152
      %p156 = scmp.eq.s32.totalorder %s27, 0
      %p157 = por %p155, %p156
      %p158 = scmp.ne.s32.totalorder %s150, %s152
      %p159 = scmp.eq.s32.totalorder %s32, 1
      %p160 = por %p158, %p159
      %p161 = scmp.ne.s32.totalorder %s152, %s153
      %p162 = scmp.eq.s32.totalorder %s32, 0
      %p163 = por %p161, %p162
      %p164 = scmp.ne.s32.totalorder %s152, %s153
      %p165 = scmp.eq.s32.totalorder %s33, 1
      %p166 = por %p164, %p165
      %p168 = scmp.ne.s32.totalorder %s153, %s167
      %p169 = scmp.eq.s32.totalorder %s33, 0
      %p170 = por %p168, %p169
      %s171 = ssub.s32 %s27, %s34
      %p172 = scmp.eq.s32.totalorder %s171, 0
      %s174 = sadd.s32 %s173, 1
      %s175 = scalar_select %p172, %s173, %s174
      %p178 = pneg %p172
      %p179 = scmp.eq.s32.totalorder %s27, 1
      %p180 = por %p178, %p179
      %p181 = scmp.ne.s32.totalorder %s173, %s176
      %p182 = scmp.eq.s32.totalorder %s27, 0
      %p183 = por %p181, %p182
      %p184 = scmp.ne.s32.totalorder %s173, %s176
      %p185 = scmp.eq.s32.totalorder %s32, 1
      %p186 = por %p184, %p185
      %p187 = scmp.ne.s32.totalorder %s176, %s177
      %p188 = scmp.eq.s32.totalorder %s32, 0
      %p189 = por %p187, %p188
      %p190 = scmp.ne.s32.totalorder %s176, %s177
      %p191 = scmp.eq.s32.totalorder %s33, 1
      %p192 = por %p190, %p191
      %p194 = scmp.ne.s32.totalorder %s177, %s193
      %p195 = scmp.eq.s32.totalorder %s33, 0
      %p196 = por %p194, %p195
      %s197 = ssub.s32 %s27, %s34
      %p198 = scmp.eq.s32.totalorder %s197, 0
      %s200 = sadd.s32 %s199, 1
      %s201 = scalar_select %p198, %s199, %s200
      %p204 = pneg %p198
      %p205 = scmp.eq.s32.totalorder %s27, 1
      %p206 = por %p204, %p205
      %p207 = scmp.ne.s32.totalorder %s199, %s202
      %p208 = scmp.eq.s32.totalorder %s27, 0
      %p209 = por %p207, %p208
      %p210 = scmp.ne.s32.totalorder %s199, %s202
      %p211 = scmp.eq.s32.totalorder %s32, 1
      %p212 = por %p210, %p211
      %p213 = scmp.ne.s32.totalorder %s202, %s203
      %p214 = scmp.eq.s32.totalorder %s32, 0
      %p215 = por %p213, %p214
      %p216 = scmp.ne.s32.totalorder %s202, %s203
      %p217 = scmp.eq.s32.totalorder %s33, 1
      %p218 = por %p216, %p217
      %p220 = scmp.ne.s32.totalorder %s203, %s219
      %p221 = scmp.eq.s32.totalorder %s33, 0
      %p222 = por %p220, %p221
      %p223 = scmp.le.s32.totalorder 1, %s27
      %p224 = scmp.lt.s32.totalorder %s27, 3
      %p225 = pnand %p223, %p224
      %p226 = pneg %p225
      // Predicated region
      $region9: #{tpu_custom_call.1} parent=5 // pred_check
        _
      $region10: #{tpu_custom_call.1} parent=5 // pred_check_branch
        %228 = sbr.rel (%p225) target = $region12
      $region11: #{tpu_custom_call.1} parent=5 // pred_region
        %s229 = ssub.s32 %s27, 1
        // Predicated region
        $region13: #{tpu_custom_call.1} parent=11 // pred_check
          %p230 = pneg %p100
        $region14: #{tpu_custom_call.1} parent=11 // pred_check_branch
          %232 = sbr.rel (%p230) target = $region16
        $region15: #{tpu_custom_call.1} parent=11 // pred_region
          %s234 = ssub.s32 512, 512
          %235 = vsyncadd [#allocation6], %s234
          %s236 = sshll.u32 [#allocation7], 4
          %s237 = int_to_ptr.vmem [resolvable:$true] %s236
          %242 = dma.hbm_to_vmem [thread:$0]  %s2, 512, %s237, [#allocation6], 128, 128, 8
        $region16: #{tpu_custom_call.1} parent=11 // pred_fallthru
          _
        // Predicated region
        $region17: #{tpu_custom_call.1} parent=11 // pred_check
          %p243 = pneg %p121
        $region18: #{tpu_custom_call.1} parent=11 // pred_check_branch
          %245 = sbr.rel (%p243) target = $region20
        $region19: #{tpu_custom_call.1} parent=11 // pred_region
          _
        $region20: #{tpu_custom_call.1} parent=11 // pred_fallthru
          _
        // Predicated region
        $region21: #{tpu_custom_call.1} parent=11 // pred_check
          %p246 = pneg %p142
        $region22: #{tpu_custom_call.1} parent=11 // pred_check_branch
          %248 = sbr.rel (%p246) target = $region24
        $region23: #{tpu_custom_call.1} parent=11 // pred_region
          %s250 = ssub.s32 512, 512
          %251 = vsyncadd [#allocation9], %s250
          %s252 = sshll.u32 [#allocation8], 4
          %s253 = int_to_ptr.vmem [resolvable:$true] %s252
          %258 = dma.hbm_to_vmem [thread:$0]  %s4, 512, %s253, [#allocation9], 128, 128, 8
        $region24: #{tpu_custom_call.1} parent=11 // pred_fallthru
          _
        // Predicated region
        $region25: #{tpu_custom_call.1} parent=11 // pred_check
          %p259 = pneg %p163
        $region26: #{tpu_custom_call.1} parent=11 // pred_check_branch
          %261 = sbr.rel (%p259) target = $region28
        $region27: #{tpu_custom_call.1} parent=11 // pred_region
          _
        $region28: #{tpu_custom_call.1} parent=11 // pred_fallthru
          _
      $region12: #{tpu_custom_call.1} parent=5 // pred_fallthru
        _
      %p262 = scmp.lt.s32.totalorder %s27, 2
      // Predicated region
      $region29: #{tpu_custom_call.1} parent=5 // pred_check
        %p263 = pneg %p262
      $region30: #{tpu_custom_call.1} parent=5 // pred_check_branch
        %265 = sbr.rel (%p263) target = $region32
      $region31: #{tpu_custom_call.1} parent=5 // pred_region
        // Predicated region
        $region33: #{tpu_custom_call.1} parent=31 // pred_check
          %p266 = pneg %p47
        $region34: #{tpu_custom_call.1} parent=31 // pred_check_branch
          %268 = sbr.rel (%p266) target = $region36
        $region35: #{tpu_custom_call.1} parent=31 // pred_region
          %s269 = sand.u32 %s37, 1
          %s270 = scalar_lea.sflag [#allocation3], %s269
          %s271 = sand.u32 %s37, 1
          %s272 = smul.addr %s271, 8
          %s273 = scalar_lea.vmem [#allocation2], %s272
          %s275 = ssub.s32 128, 128
          %276 = vsyncadd %s270, %s275
          %s277 = smul.addr %s27, 128
          %s278 = scalar_lea.hbm %s0, %s277
          %s280 = sshll.u32 %s273, 4
          %s281 = int_to_ptr.vmem [resolvable:$true] %s280
          %283 = dma.hbm_to_vmem [thread:$0]  %s278, 128, %s281, %s270
        $region36: #{tpu_custom_call.1} parent=31 // pred_fallthru
          _
        // Predicated region
        $region37: #{tpu_custom_call.1} parent=31 // pred_check
          %p284 = pneg %p73
        $region38: #{tpu_custom_call.1} parent=31 // pred_check_branch
          %286 = sbr.rel (%p284) target = $region40
        $region39: #{tpu_custom_call.1} parent=31 // pred_region
          %s287 = sand.u32 %s27, 1
          %s288 = scalar_lea.sflag [#allocation6], %s287
          %s289 = sand.u32 %s63, 1
          %s290 = smul.addr %s289, 8
          %s291 = scalar_lea.vmem [#allocation5], %s290
          %s293 = ssub.s32 128, 128
          %294 = vsyncadd %s288, %s293
          %s295 = smul.addr %s27, 128
          %s296 = scalar_lea.hbm %s1, %s295
          %s298 = sshll.u32 %s291, 4
          %s299 = int_to_ptr.vmem [resolvable:$true] %s298
          %301 = dma.hbm_to_vmem [thread:$0]  %s296, 128, %s299, %s288
        $region40: #{tpu_custom_call.1} parent=31 // pred_fallthru
          _
      $region32: #{tpu_custom_call.1} parent=5 // pred_fallthru
        _
      %p302 = scmp.le.s32.totalorder 1, %s27
      %p303 = scmp.lt.s32.totalorder %s27, 3
      %p304 = pnand %p302, %p303
      %p305 = pneg %p304
      // Predicated region
      $region41: #{tpu_custom_call.1} parent=5 // pred_check
        _
      $region42: #{tpu_custom_call.1} parent=5 // pred_check_branch
        %307 = sbr.rel (%p304) target = $region44
      $region43: #{tpu_custom_call.1} parent=5 // pred_region
        %s308 = ssub.s32 %s27, 1
        %s309 = sand.u32 %s40, 1
        %s310 = scalar_lea.sflag [#allocation3], %s309
        %s311 = sand.u32 %s40, 1
        %s312 = smul.addr %s311, 8
        %s313 = scalar_lea.vmem [#allocation2], %s312
        // Predicated region
        $region45: #{tpu_custom_call.1} parent=43 // pred_check
          %p314 = pneg %p53
        $region46: #{tpu_custom_call.1} parent=43 // pred_check_branch
          %316 = sbr.rel (%p314) target = $region48
        $region47: #{tpu_custom_call.1} parent=43 // pred_region
          %317 = dma.done %s310, 128
        $region48: #{tpu_custom_call.1} parent=43 // pred_fallthru
          _
        %s318 = sand.u32 %s32, 1
        %s319 = scalar_lea.sflag [#allocation6], %s318
        %s320 = sand.u32 %s66, 1
        %s321 = smul.addr %s320, 8
        %s322 = scalar_lea.vmem [#allocation5], %s321
        // Predicated region
        $region49: #{tpu_custom_call.1} parent=43 // pred_check
          %p323 = pneg %p79
        $region50: #{tpu_custom_call.1} parent=43 // pred_check_branch
          %325 = sbr.rel (%p323) target = $region52
        $region51: #{tpu_custom_call.1} parent=43 // pred_region
          %326 = dma.done %s319, 128
        $region52: #{tpu_custom_call.1} parent=43 // pred_fallthru
          _
        // Predicated region
        $region53: #{tpu_custom_call.1} parent=43 // pred_check
          %p327 = pneg %p100
        $region54: #{tpu_custom_call.1} parent=43 // pred_check_branch
          %329 = sbr.rel (%p327) target = $region56
        $region55: #{tpu_custom_call.1} parent=43 // pred_region
          %330 = dma.done [#allocation6], 512
        $region56: #{tpu_custom_call.1} parent=43 // pred_fallthru
          _
        // Predicated region
        $region57: #{tpu_custom_call.1} parent=43 // pred_check
          %p331 = pneg %p142
        $region58: #{tpu_custom_call.1} parent=43 // pred_check_branch
          %333 = sbr.rel (%p331) target = $region60
        $region59: #{tpu_custom_call.1} parent=43 // pred_region
          %334 = dma.done [#allocation9], 512
        $region60: #{tpu_custom_call.1} parent=43 // pred_fallthru
          _
        %s335 = sand.u32 %s40, 1
        %s336 = scalar_lea.sflag [#allocation3], %s335
        %s337 = sand.u32 %s40, 1
        %s338 = smul.addr %s337, 8
        %s339 = scalar_lea.vmem [#allocation2], %s338
        %p340 = pneg %p53
        %p341 = pneg %p50
        %s342 = sand.u32 %s32, 1
        %s343 = scalar_lea.sflag [#allocation6], %s342
        %s344 = sand.u32 %s66, 1
        %s345 = smul.addr %s344, 8
        %s346 = scalar_lea.vmem [#allocation5], %s345
        %p347 = pneg %p79
        %p348 = pneg %p76
        %p349 = pneg %p100
        %p350 = pneg %p97
        %p351 = pneg %p121
        %p352 = pneg %p118
        %p353 = pneg %p142
        %p354 = pneg %p139
        %p355 = pneg %p163
        %p356 = pneg %p160
        %p357 = pneg %p189
        %p358 = pneg %p186
        %s359 = sand.u32 %s176, 1
        %s360 = scalar_lea.sflag [#allocation4], %s359
        %s361 = sand.u32 %s176, 1
        %s362 = smul.addr %s361, 8
        %s363 = scalar_lea.vmem [#allocation10], %s362
        %p364 = pneg %p215
        %p365 = pneg %p212
        %s366 = sand.u32 %s202, 1
        %s367 = scalar_lea.sflag [#allocation12], %s366
        %s368 = sand.u32 %s202, 1
        %s369 = smul.addr %s368, 8
        %s370 = scalar_lea.vmem [#allocation11], %s369
        %v371 = vld [vmem:[%s313] sm:$0xff]
        %v372 = vld [vmem:[%s322] sm:$0xff]
        %v373 = vld [vmem:[#allocation7] sm:$0xff]
        %v374 = vld [vmem:[#allocation7 + $0x8] sm:$0xff]
        %v375 = vld [vmem:[#allocation7 + $0x10] sm:$0xff]
        %v376 = vld [vmem:[#allocation7 + $0x18] sm:$0xff]
        %v377 = vld [vmem:[%s3] sm:$0x1]
        %v379 = vlaneseq
        %v380 = vshrl.u32 %v379, 7
        %v381 = vsub.s32 0, %v380
        %v382 = vrot.slane %v377, %v381
        %vm384 = vcmask 261120
        %v386 = vsel %vm384, %v371, 0
        %388 = vmatprep.subr.mxu0 0.0
        %389 = vmatpush1.msra.mxu0 %v373
        %390 = vmatprep.subr.mxu0 0.0
        %391 = vmatpush1.msra.mxu0 %v374
        %392 = vmatprep.subr.mxu0 0.0
        %393 = vmatpush1.msra.mxu0 %v375
        %394 = vmatprep.subr.mxu0 0.0
        %395 = vmatpush1.msra.mxu0 %v376
        %396 = vmatprep.subr.mxu0 0.0
        %397 = vmatpush1.msra.mxu0 0.0
        %398 = vmatprep.subr.mxu0 0.0
        %399 = vmatpush1.msra.mxu0 0.0
        %400 = vmatprep.subr.mxu0 0.0
        %401 = vmatpush1.msra.mxu0 0.0
        %402 = vmatprep.subr.mxu0 0.0
        %403 = vmatpush1.msra.mxu0 0.0
        %404 = vmatprep.subr.mxu0 0.0
        %405 = vmatpush1.msra.mxu0 0.0
        %406 = vmatprep.subr.mxu0 0.0
        %407 = vmatpush1.msra.mxu0 0.0
        %408 = vmatprep.subr.mxu0 0.0
        %409 = vmatpush1.msra.mxu0 0.0
        %410 = vmatprep.subr.mxu0 0.0
        %411 = vmatpush1.msra.mxu0 0.0
        %412 = vmatprep.subr.mxu0 0.0
        %413 = vmatpush1.msra.mxu0 0.0
        %414 = vmatprep.subr.mxu0 0.0
        %415 = vmatpush1.msra.mxu0 0.0
        %416 = vmatprep.subr.mxu0 0.0
        %417 = vmatpush1.msra.mxu0 0.0
        %418 = vmatprep.subr.mxu0 0.0
        %419 = vmatpush1.msra.mxu0 0.0
        %420 = vmatprep.subr.mxu0 0.0
        %421 = vmatpush1.msra.mxu0 0.0
        %422 = vmatprep.subr.mxu0 0.0
        %423 = vmatpush1.msra.mxu0 0.0
        %424 = vmatprep.subr.mxu0 0.0
        %425 = vmatpush1.msra.mxu0 0.0
        %426 = vmatprep.subr.mxu0 0.0
        %427 = vmatpush1.msra.mxu0 0.0
        %428 = vmatprep.subr.mxu0 0.0
        %429 = vmatpush1.msra.mxu0 0.0
        %430 = vmatprep.subr.mxu0 0.0
        %431 = vmatpush1.msra.mxu0 0.0
        %432 = vmatprep.subr.mxu0 0.0
        %433 = vmatpush1.msra.mxu0 0.0
        %434 = vmatprep.subr.mxu0 0.0
        %435 = vmatpush1.msra.mxu0 0.0
        %436 = vmatprep.subr.mxu0 0.0
        %437 = vmatpush1.msra.mxu0 0.0
        %438 = vmatprep.subr.mxu0 0.0
        %439 = vmatpush1.msra.mxu0 0.0
        %440 = vmatprep.subr.mxu0 0.0
        %441 = vmatpush1.msra.mxu0 0.0
        %442 = vmatprep.subr.mxu0 0.0
        %443 = vmatpush1.msra.mxu0 0.0
        %444 = vmatprep.subr.mxu0 0.0
        %445 = vmatpush1.msra.mxu0 0.0
        %446 = vmatprep.subr.mxu0 0.0
        %447 = vmatpush1.msra.mxu0 0.0
        %448 = vmatprep.subr.mxu0 0.0
        %449 = vmatpush1.msra.mxu0 0.0
        %450 = vmatprep.subr.mxu0 0.0
        %451 = vmatpush1.msra.mxu0 0.0
        %452 = vmatprep.mubr.f32.mxu0 0.0
        %453 = vmatmul.mubr.f32.gmra.mrb[0].mxu0 %v386
        %v454 = vpop.f32.mrb[0].mxu0
        %v455 = vadd.f32 %v382, %v454
        %v456 = vpop.f32.mrb[0].mxu0
        %457 = vdwg.mxu0
        %458 = vst.msk [vmem:[%s363] sm:$0xff] %vm384, %v455
        %v459 = vld [vmem:[#allocation8] sm:$0xff]
        %v460 = vld [vmem:[#allocation8 + $0x8] sm:$0xff]
        %v461 = vld [vmem:[#allocation8 + $0x10] sm:$0xff]
        %v462 = vld [vmem:[#allocation8 + $0x18] sm:$0xff]
        %v463 = vld [vmem:[%s5] sm:$0x1]
        %v465 = vlaneseq
        %v466 = vshrl.u32 %v465, 7
        %v467 = vsub.s32 0, %v466
        %v468 = vrot.slane %v463, %v467
        %v471 = vsel %vm384, %v372, 0
        %473 = vmatprep.subr.mxu0 0.0
        %474 = vmatpush1.msra.mxu0 %v459
        %475 = vmatprep.subr.mxu0 0.0
        %476 = vmatpush1.msra.mxu0 %v460
        %477 = vmatprep.subr.mxu0 0.0
        %478 = vmatpush1.msra.mxu0 %v461
        %479 = vmatprep.subr.mxu0 0.0
        %480 = vmatpush1.msra.mxu0 %v462
        %481 = vmatprep.subr.mxu0 0.0
        %482 = vmatpush1.msra.mxu0 0.0
        %483 = vmatprep.subr.mxu0 0.0
        %484 = vmatpush1.msra.mxu0 0.0
        %485 = vmatprep.subr.mxu0 0.0
        %486 = vmatpush1.msra.mxu0 0.0
        %487 = vmatprep.subr.mxu0 0.0
        %488 = vmatpush1.msra.mxu0 0.0
        %489 = vmatprep.subr.mxu0 0.0
        %490 = vmatpush1.msra.mxu0 0.0
        %491 = vmatprep.subr.mxu0 0.0
        %492 = vmatpush1.msra.mxu0 0.0
        %493 = vmatprep.subr.mxu0 0.0
        %494 = vmatpush1.msra.mxu0 0.0
        %495 = vmatprep.subr.mxu0 0.0
        %496 = vmatpush1.msra.mxu0 0.0
        %497 = vmatprep.subr.mxu0 0.0
        %498 = vmatpush1.msra.mxu0 0.0
        %499 = vmatprep.subr.mxu0 0.0
        %500 = vmatpush1.msra.mxu0 0.0
        %501 = vmatprep.subr.mxu0 0.0
        %502 = vmatpush1.msra.mxu0 0.0
        %503 = vmatprep.subr.mxu0 0.0
        %504 = vmatpush1.msra.mxu0 0.0
        %505 = vmatprep.subr.mxu0 0.0
        %506 = vmatpush1.msra.mxu0 0.0
        %507 = vmatprep.subr.mxu0 0.0
        %508 = vmatpush1.msra.mxu0 0.0
        %509 = vmatprep.subr.mxu0 0.0
        %510 = vmatpush1.msra.mxu0 0.0
        %511 = vmatprep.subr.mxu0 0.0
        %512 = vmatpush1.msra.mxu0 0.0
        %513 = vmatprep.subr.mxu0 0.0
        %514 = vmatpush1.msra.mxu0 0.0
        %515 = vmatprep.subr.mxu0 0.0
        %516 = vmatpush1.msra.mxu0 0.0
        %517 = vmatprep.subr.mxu0 0.0
        %518 = vmatpush1.msra.mxu0 0.0
        %519 = vmatprep.subr.mxu0 0.0
        %520 = vmatpush1.msra.mxu0 0.0
        %521 = vmatprep.subr.mxu0 0.0
        %522 = vmatpush1.msra.mxu0 0.0
        %523 = vmatprep.subr.mxu0 0.0
        %524 = vmatpush1.msra.mxu0 0.0
        %525 = vmatprep.subr.mxu0 0.0
        %526 = vmatpush1.msra.mxu0 0.0
        %527 = vmatprep.subr.mxu0 0.0
        %528 = vmatpush1.msra.mxu0 0.0
        %529 = vmatprep.subr.mxu0 0.0
        %530 = vmatpush1.msra.mxu0 0.0
        %531 = vmatprep.subr.mxu0 0.0
        %532 = vmatpush1.msra.mxu0 0.0
        %533 = vmatprep.subr.mxu0 0.0
        %534 = vmatpush1.msra.mxu0 0.0
        %535 = vmatprep.subr.mxu0 0.0
        %536 = vmatpush1.msra.mxu0 0.0
        %537 = vmatprep.mubr.f32.mxu0 0.0
        %538 = vmatmul.mubr.f32.gmra.mrb[0].mxu0 %v471
        %v539 = vpop.f32.mrb[0].mxu0
        %v540 = vadd.f32 %v468, %v539
        %v541 = vpop.f32.mrb[0].mxu0
        %542 = vdwg.mxu0
        %543 = vst.msk [vmem:[%s370] sm:$0xff] %vm384, %v540
        %s544 = sand.u32 %s176, 1
        %s545 = scalar_lea.sflag [#allocation4], %s544
        %s546 = sand.u32 %s176, 1
        %s547 = smul.addr %s546, 8
        %s548 = scalar_lea.vmem [#allocation10], %s547
        %s549 = sand.u32 %s202, 1
        %s550 = scalar_lea.sflag [#allocation12], %s549
        %s551 = sand.u32 %s202, 1
        %s552 = smul.addr %s551, 8
        %s553 = scalar_lea.vmem [#allocation11], %s552
        // Predicated region
        $region61: #{tpu_custom_call.1} parent=43 // pred_check
          %p554 = pneg %p186
        $region62: #{tpu_custom_call.1} parent=43 // pred_check_branch
          %556 = sbr.rel (%p554) target = $region64
        $region63: #{tpu_custom_call.1} parent=43 // pred_region
          %s558 = ssub.s32 128, 128
          %559 = vsyncadd %s545, %s558
          %s560 = smul.addr %s32, 128
          %s561 = scalar_lea.hbm %s6, %s560
          %s563 = sshll.u32 %s548, 4
          %s564 = int_to_ptr.vmem [resolvable:$true] %s563
          %566 = dma.vmem_to_hbm [thread:$0]  %s564, 128, %s561, %s545
        $region64: #{tpu_custom_call.1} parent=43 // pred_fallthru
          _
        // Predicated region
        $region65: #{tpu_custom_call.1} parent=43 // pred_check
          %p567 = pneg %p212
        $region66: #{tpu_custom_call.1} parent=43 // pred_check_branch
          %569 = sbr.rel (%p567) target = $region68
        $region67: #{tpu_custom_call.1} parent=43 // pred_region
          %s571 = ssub.s32 128, 128
          %572 = vsyncadd %s550, %s571
          %s573 = smul.addr %s32, 128
          %s574 = scalar_lea.hbm %s7, %s573
          %s576 = sshll.u32 %s553, 4
          %s577 = int_to_ptr.vmem [resolvable:$true] %s576
          %579 = dma.vmem_to_hbm [thread:$0]  %s577, 128, %s574, %s550
        $region68: #{tpu_custom_call.1} parent=43 // pred_fallthru
          _
      $region44: #{tpu_custom_call.1} parent=5 // pred_fallthru
        _
      %p580 = scmp.le.s32.totalorder 2, %s27
      // Predicated region
      $region69: #{tpu_custom_call.1} parent=5 // pred_check
        %p581 = pneg %p580
      $region70: #{tpu_custom_call.1} parent=5 // pred_check_branch
        %583 = sbr.rel (%p581) target = $region72
      $region71: #{tpu_custom_call.1} parent=5 // pred_region
        %s584 = ssub.s32 %s27, 2
        // Predicated region
        $region73: #{tpu_custom_call.1} parent=71 // pred_check
          %p585 = pneg %p192
        $region74: #{tpu_custom_call.1} parent=71 // pred_check_branch
          %587 = sbr.rel (%p585) target = $region76
        $region75: #{tpu_custom_call.1} parent=71 // pred_region
          %s588 = sand.u32 %s177, 1
          %s589 = scalar_lea.sflag [#allocation4], %s588
          %s590 = sand.u32 %s177, 1
          %s591 = smul.addr %s590, 8
          %s592 = scalar_lea.vmem [#allocation10], %s591
          %593 = dma.done %s589, 128
        $region76: #{tpu_custom_call.1} parent=71 // pred_fallthru
          _
        // Predicated region
        $region77: #{tpu_custom_call.1} parent=71 // pred_check
          %p594 = pneg %p218
        $region78: #{tpu_custom_call.1} parent=71 // pred_check_branch
          %596 = sbr.rel (%p594) target = $region80
        $region79: #{tpu_custom_call.1} parent=71 // pred_region
          %s597 = sand.u32 %s203, 1
          %s598 = scalar_lea.sflag [#allocation12], %s597
          %s599 = sand.u32 %s203, 1
          %s600 = smul.addr %s599, 8
          %s601 = scalar_lea.vmem [#allocation11], %s600
          %602 = dma.done %s598, 128
        $region80: #{tpu_custom_call.1} parent=71 // pred_fallthru
          _
      $region72: #{tpu_custom_call.1} parent=5 // pred_fallthru
        _
    $region6: #{tpu_custom_call.1} parent=1 // loop_footer
      %s31 = sadd.s32 1, %s27
    $region7: #{tpu_custom_call.1} parent=1 // loop_footer_branch
      %26 = sbr.rel target = $region3
    $region8: #{tpu_custom_call.1} parent=1 // loop_exit
      _
    %603 = vsyncpa [#allocation3], 1
    %s604 = scalar_lea.sflag [#allocation3], 1
    %605 = vsyncpa %s604, 1
    %606 = vsyncpa [#allocation6], 1
    %s607 = scalar_lea.sflag [#allocation6], 1
    %608 = vsyncpa %s607, 1
    %609 = vsyncpa [#allocation9], 1
    %610 = vsyncpa [#allocation4], 1
    %s611 = scalar_lea.sflag [#allocation4], 1
    %612 = vsyncpa %s611, 1
    %613 = vsyncpa [#allocation12], 1
    %s614 = scalar_lea.sflag [#allocation12], 1
    %615 = vsyncpa %s614, 1

</llo_original>
